<compile_context>
chip_gen: v6e
topology: v6e:2x2x1
jax: 0.10.0
libtpu: 0.0.40
codegen_flags: <defaults>
</compile_context>

<pallas_src>
import functools

import jax
import jax.numpy as jnp
from jax import lax
from jax.experimental import pallas as pl
from jax.experimental.pallas import tpu as pltpu

LANES = 128          # vreg lane width (last dim of every block)
SUBLANES = 8         # f32 sublanes; shape of the resident accumulator
CHUNK_ROWS = 256     # rows per in-kernel reduction chunk (bounds vreg live ranges)
SMALL_ROWS = 256     # below this, use a single sublane-aligned block


def _round_up(x, m):
    return ((x + m - 1) // m) * m


def _cdiv(a, b):
    return -(-a // b)


def _sublane_multiple(*dtypes):
    """Dtype-aware sublane packing: f32 -> 8, bf16/f16 -> 16, int8/fp8 -> 32."""
    m = SUBLANES
    for dt in dtypes:
        itemsize = jnp.dtype(dt).itemsize
        m = max(m, SUBLANES * max(1, 4 // max(1, itemsize)))
    return m


def _max_row_tile():
    """Generation-dependent row tile (lane dim fixed at 128)."""
    kind = ""
    try:
        kind = jax.devices()[0].device_kind.lower()
    except Exception:
        pass
    if "v7" in kind:
        # ~3.2 TB/s HBM: 8192x128 f32 = 4 MiB/buffer, 16 MiB double-buffered
        # inputs — inside v7x's 32 MiB scoped-VMEM default.
        return 8192
    # v5e/v6e: 4096x128 f32 = 2 MiB/buffer, 8 MiB double-buffered inputs —
    # inside even v5e's 16 MiB scoped-VMEM default.
    return 4096


def _num_tensorcores():
    """TensorCores per chip (1 on v5e/v6e, 2 on v7x), with safe fallbacks."""
    try:
        info = pltpu.get_tpu_info()
        for attr in ("num_cores", "tensorcore_count", "core_count", "num_tensorcores"):
            v = getattr(info, attr, None)
            if isinstance(v, int) and v > 0:
                return min(v, 2)
    except Exception:
        pass
    try:
        if "v7" in jax.devices()[0].device_kind.lower():
            return 2
    except Exception:
        pass
    return 1


def _hinge_kernel(pred_ref, targ_ref, partial_ref, *, valid_rows, row_tile,
                  blocks_per_shard, chunk):
    s = pl.program_id(0)     # shard (one per TensorCore on v7x)
    j = pl.program_id(1)     # row block within the shard (sequential axis)

    @pl.when(j == 0)
    def _init():
        partial_ref[...] = jnp.zeros_like(partial_ref)

    row0 = (s * blocks_per_shard + j) * row_tile   # global row offset of block
    num_chunks = row_tile // chunk                 # static
    unroll = 2 if num_chunks >= 2 else 1

    def chunk_losses(g):
        start = pl.multiple_of(g * chunk, chunk)
        p = pred_ref[pl.ds(start, chunk), :].astype(jnp.float32)
        t = targ_ref[pl.ds(start, chunk), :].astype(jnp.float32)
        return jnp.maximum(1.0 - p * t, 0.0)       # (chunk, LANES)

    def to_sublane_groups(x):
        # (chunk, LANES) -> (SUBLANES, LANES): sublane-grouped VPU adds only;
        # the expensive cross-lane reduce happens once in the wrapper.
        return x.reshape(-1, SUBLANES, LANES).sum(axis=0)

    zero_acc = jnp.zeros((SUBLANES, LANES), jnp.float32)

    @pl.when(row0 + row_tile <= valid_rows)
    def _full_block():                             # fast path: no masking
        def body(g, acc):
            return acc + to_sublane_groups(chunk_losses(g))
        partial_ref[...] += lax.fori_loop(0, num_chunks, body, zero_acc,
                                          unroll=unroll)

    @pl.when(row0 + row_tile > valid_rows)
    def _edge_block():                             # ragged tail: mask stale rows
        remaining = valid_rows - row0              # <= 0 for shard-padding blocks
        def body(g, acc):
            losses = chunk_losses(g)
            local = lax.broadcasted_iota(jnp.int32, (chunk, LANES), 0) + g * chunk
            losses = jnp.where(local < remaining, losses, 0.0)
            return acc + to_sublane_groups(losses)
        partial_ref[...] += lax.fori_loop(0, num_chunks, body, zero_acc,
                                          unroll=unroll)


def hinge_loss(predictions, targets):
    """Mean hinge loss via a Pallas TPU kernel. Returns a scalar f32."""
    assert predictions.shape == targets.shape
    n = predictions.size
    assert n > 0

    sub_mult = _sublane_multiple(predictions.dtype, targets.dtype)
    rows = _cdiv(n, LANES)

    if rows <= SMALL_ROWS:
        row_tile = _round_up(rows, sub_mult)       # one small, aligned block
        chunk = row_tile
        rows_store = row_tile
    else:
        # Tile is a multiple of CHUNK_ROWS and never larger than the array, so
        # no block/shard-alignment padding of the inputs is ever needed.
        row_tile = min(_max_row_tile(), (rows // CHUNK_ROWS) * CHUNK_ROWS)
        chunk = CHUNK_ROWS
        rows_store = rows

    pad = rows_store * LANES - n
    pred_flat = predictions.reshape(-1)
    targ_flat = targets.reshape(-1)
    if pad:
        # Minimal sentinel pad only (<128 elements for large inputs, a few
        # sublane rows for tiny ones): pred=2, targ=1 -> margin = -1 -> clamps
        # to 0.  Lane-aligned inputs take the zero-copy path.
        pred_flat = jnp.pad(pred_flat, (0, pad), constant_values=2)
        targ_flat = jnp.pad(targ_flat, (0, pad), constant_values=1)
    pred_2d = pred_flat.reshape(rows_store, LANES)
    targ_2d = targ_flat.reshape(rows_store, LANES)

    total_blocks = _cdiv(rows_store, row_tile)
    num_shards = max(1, min(_num_tensorcores(), total_blocks))
    blocks_per_shard = _cdiv(total_blocks, num_shards)

    def in_map(s, j):
        b = s * blocks_per_shard + j
        # Clamp shard-rounding blocks in-bounds; the kernel masks them to zero.
        return (jnp.minimum(b, total_blocks - 1), 0)

    kernel = functools.partial(
        _hinge_kernel, valid_rows=rows_store, row_tile=row_tile,
        blocks_per_shard=blocks_per_shard, chunk=chunk)

    partials = pl.pallas_call(
        kernel,
        out_shape=jax.ShapeDtypeStruct((num_shards * SUBLANES, LANES),
                                       jnp.float32),
        grid_spec=pltpu.PrefetchScalarGridSpec(
            num_scalar_prefetch=0,
            grid=(num_shards, blocks_per_shard),
            in_specs=[
                pl.BlockSpec((row_tile, LANES), in_map),
                pl.BlockSpec((row_tile, LANES), in_map),
            ],
            out_specs=pl.BlockSpec((SUBLANES, LANES), lambda s, j: (s, 0)),
        ),
        compiler_params=pltpu.CompilerParams(
            # TODO(synk): on v7x, verify in the profile that the shard axis
            # lands one shard per TensorCore; if not, switch that axis to
            # pltpu.CORE_PARALLEL.
            dimension_semantics=(pltpu.PARALLEL, pltpu.ARBITRARY),
        ),
    )(pred_2d, targ_2d)

    # One tiny cross-lane reduce + per-shard combine, done once outside the hot
    # loop; divide by the true (unpadded) element count.
    return jnp.sum(partials) / jnp.float32(n)


def _reference(predictions, targets):
    p = predictions.astype(jnp.float32)
    t = targets.astype(jnp.float32)
    return jnp.mean(jnp.maximum(1.0 - p * t, 0.0))


if __name__ == "__main__":
    key = jax.random.PRNGKey(0)
    k1, k2, k3, k4, k5, k6 = jax.random.split(key, 6)

    def rand_labels(k, shape):
        return jnp.where(jax.random.bernoulli(k, 0.5, shape), 1.0, -1.0
                         ).astype(jnp.float32)

    # Case 1: tiny, lane-aligned (single small block, sublane-rounded).
    pred_a = jax.random.normal(k1, (2, 256), dtype=jnp.float32)
    targ_a = rand_labels(k2, (2, 256))
    loss_a = jax.block_until_ready(hinge_loss(pred_a, targ_a))
    ref_a = _reference(pred_a, targ_a)
    assert jnp.allclose(loss_a, ref_a, rtol=1e-5, atol=1e-6), (loss_a, ref_a)

    # Case 2: tiny, fully unaligned (exercises the minimal sentinel pad).
    pred_b = jax.random.normal(k3, (33, 77), dtype=jnp.float32)
    targ_b = rand_labels(k4, (33, 77))
    loss_b = jax.block_until_ready(hinge_loss(pred_b, targ_b))
    ref_b = _reference(pred_b, targ_b)
    assert jnp.allclose(loss_b, ref_b, rtol=1e-5, atol=1e-6), (loss_b, ref_b)

    # Case 3: zero-copy multi-block path with a ragged edge block (full block +
    # in-kernel row-masked tail, chunked fori_loop reduction).
    pred_c = jax.random.normal(k5, (4200, 128), dtype=jnp.float32)
    targ_c = rand_labels(k6, (4200, 128))
    loss_c = jax.block_until_ready(hinge_loss(pred_c, targ_c))
    ref_c = _reference(pred_c, targ_c)
    assert jnp.allclose(loss_c, ref_c, rtol=1e-5, atol=1e-6), (loss_c, ref_c)

    print("KERNEL_OK")
</pallas_src>

<mosaic_0001>
module attributes {stable_mosaic.version = 11 : i64} {
  func.func @_hinge_kernel(%arg0: i32, %arg1: i32, %arg2: memref<8x128xf32, #tpu.memory_space<vmem>>, %arg3: memref<8x128xf32, #tpu.memory_space<vmem>>, %arg4: memref<8x128xf32, #tpu.memory_space<vmem>>) attributes {dimension_semantics = [#tpu.dimension_semantics<parallel>, #tpu.dimension_semantics<arbitrary>], iteration_bounds = array<i64: 1, 1>, scalar_prefetch = 0 : i64, scratch_operands = 0 : i64, tpu.core_type = #tpu.core_type<tc>, window_params = [{transform_indices = @transform_0, window_bounds = array<i64: 8, 128>}, {transform_indices = @transform_1, window_bounds = array<i64: 8, 128>}, {transform_indices = @transform_2, window_bounds = array<i64: 8, 128>}]} {
    %c0_i32 = arith.constant 0 : i32
    %0 = arith.cmpi eq, %arg1, %c0_i32 : i32
    %1 = arith.extui %0 : i1 to i32
    %c0_i32_0 = arith.constant 0 : i32
    %2 = arith.cmpi ne, %1, %c0_i32_0 : i32
    scf.if %2 {
      %cst_7 = arith.constant 0.000000e+00 : f32
      %15 = vector.broadcast %cst_7 : f32 to vector<8x128xf32>
      %c0 = arith.constant 0 : index
      %c0_8 = arith.constant 0 : index
      %16 = vector.load %arg4[%c0, %c0_8] : memref<8x128xf32, #tpu.memory_space<vmem>>, vector<8x128xf32>
      tpu.vector_store %arg4[%c0, %c0_8], %15 {strides = array<i32>} : memref<8x128xf32, #tpu.memory_space<vmem>>, vector<8x128xf32>,
    } else {
    }
    %c1_i32 = arith.constant 1 : i32
    %3 = arith.muli %arg0, %c1_i32 : i32
    %4 = arith.addi %3, %arg1 : i32
    %c8_i32 = arith.constant 8 : i32
    %5 = arith.muli %4, %c8_i32 : i32
    %cst = arith.constant 0.000000e+00 : f32
    %6 = vector.broadcast %cst : f32 to vector<8x128xf32>
    %c8_i32_1 = arith.constant 8 : i32
    %7 = arith.addi %5, %c8_i32_1 : i32
    %c8_i32_2 = arith.constant 8 : i32
    %8 = arith.cmpi sle, %7, %c8_i32_2 : i32
    %9 = arith.extui %8 : i1 to i32
    %c0_i32_3 = arith.constant 0 : i32
    %10 = arith.cmpi ne, %9, %c0_i32_3 : i32
    scf.if %10 {
      %c0 = arith.constant 0 : index
      %c0_7 = arith.constant 0 : index
      %15 = vector.load %arg4[%c0, %c0_7] : memref<8x128xf32, #tpu.memory_space<vmem>>, vector<8x128xf32>
      %c0_i32_8 = arith.constant 0 : i32
      %c8_i32_9 = arith.constant 8 : i32
      %16 = arith.muli %c0_i32_8, %c8_i32_9 : i32
      %17 = tpu.assume_multiple %16, 8 : i32
      %18 = arith.index_cast %17 : i32 to index
      %c0_10 = arith.constant 0 : index
      %19 = vector.load %arg2[%18, %c0_10] : memref<8x128xf32, #tpu.memory_space<vmem>>, vector<8x128xf32>
      %20 = arith.index_cast %17 : i32 to index
      %c0_11 = arith.constant 0 : index
      %21 = vector.load %arg3[%20, %c0_11] : memref<8x128xf32, #tpu.memory_space<vmem>>, vector<8x128xf32>
      %22 = arith.mulf %19, %21 : vector<8x128xf32>
      %cst_12 = arith.constant 1.000000e+00 : f32
      %23 = vector.broadcast %cst_12 : f32 to vector<8x128xf32>
      %24 = arith.subf %23, %22 : vector<8x128xf32>
      %cst_13 = arith.constant 0.000000e+00 : f32
      %25 = vector.broadcast %cst_13 : f32 to vector<8x128xf32>
      %26 = arith.maximumf %24, %25 : vector<8x128xf32>
      %27 = vector.shape_cast %26 : vector<8x128xf32> to vector<1x8x128xf32>
      %cst_14 = arith.constant dense<0.000000e+00> : vector<8x128xf32>
      %28 = vector.multi_reduction <add>, %27, %cst_14 [0] : vector<1x8x128xf32> to vector<8x128xf32>
      %29 = arith.addf %6, %28 : vector<8x128xf32>
      %c1_i32_15 = arith.constant 1 : i32
      %30 = arith.addf %15, %29 : vector<8x128xf32>
      %c0_16 = arith.constant 0 : index
      %c0_17 = arith.constant 0 : index
      %31 = vector.load %arg4[%c0_16, %c0_17] : memref<8x128xf32, #tpu.memory_space<vmem>>, vector<8x128xf32>
      tpu.vector_store %arg4[%c0_16, %c0_17], %30 {strides = array<i32>} : memref<8x128xf32, #tpu.memory_space<vmem>>, vector<8x128xf32>,
    } else {
    }
    %c8_i32_4 = arith.constant 8 : i32
    %11 = arith.addi %5, %c8_i32_4 : i32
    %c8_i32_5 = arith.constant 8 : i32
    %12 = arith.cmpi sgt, %11, %c8_i32_5 : i32
    %13 = arith.extui %12 : i1 to i32
    %c0_i32_6 = arith.constant 0 : i32
    %14 = arith.cmpi ne, %13, %c0_i32_6 : i32
    scf.if %14 {
      %c8_i32_7 = arith.constant 8 : i32
      %15 = arith.subi %c8_i32_7, %5 : i32
      %c0 = arith.constant 0 : index
      %c0_8 = arith.constant 0 : index
      %16 = vector.load %arg4[%c0, %c0_8] : memref<8x128xf32, #tpu.memory_space<vmem>>, vector<8x128xf32>
      %c0_i32_9 = arith.constant 0 : i32
      %c8_i32_10 = arith.constant 8 : i32
      %17 = arith.muli %c0_i32_9, %c8_i32_10 : i32
      %18 = tpu.assume_multiple %17, 8 : i32
      %19 = arith.index_cast %18 : i32 to index
      %c0_11 = arith.constant 0 : index
      %20 = vector.load %arg2[%19, %c0_11] : memref<8x128xf32, #tpu.memory_space<vmem>>, vector<8x128xf32>
      %21 = arith.index_cast %18 : i32 to index
      %c0_12 = arith.constant 0 : index
      %22 = vector.load %arg3[%21, %c0_12] : memref<8x128xf32, #tpu.memory_space<vmem>>, vector<8x128xf32>
      %23 = arith.mulf %20, %22 : vector<8x128xf32>
      %cst_13 = arith.constant 1.000000e+00 : f32
      %24 = vector.broadcast %cst_13 : f32 to vector<8x128xf32>
      %25 = arith.subf %24, %23 : vector<8x128xf32>
      %cst_14 = arith.constant 0.000000e+00 : f32
      %26 = vector.broadcast %cst_14 : f32 to vector<8x128xf32>
      %27 = arith.maximumf %25, %26 : vector<8x128xf32>
      %28 = tpu.iota {dimensions = array<i32: 0>} : vector<8x128xi32>
      %c8_i32_15 = arith.constant 8 : i32
      %29 = arith.muli %c0_i32_9, %c8_i32_15 : i32
      %30 = vector.broadcast %29 : i32 to vector<8x128xi32>
      %31 = arith.addi %28, %30 : vector<8x128xi32>
      %32 = vector.broadcast %15 : i32 to vector<8x128xi32>
      %33 = arith.cmpi slt, %31, %32 : vector<8x128xi32>
      %cst_16 = arith.constant 0.000000e+00 : f32
      %34 = vector.broadcast %cst_16 : f32 to vector<8x128xf32>
      %35 = arith.select %33, %27, %34 : vector<8x128xi1>, vector<8x128xf32>
      %36 = vector.shape_cast %35 : vector<8x128xf32> to vector<1x8x128xf32>
      %cst_17 = arith.constant dense<0.000000e+00> : vector<8x128xf32>
      %37 = vector.multi_reduction <add>, %36, %cst_17 [0] : vector<1x8x128xf32> to vector<8x128xf32>
      %38 = arith.addf %6, %37 : vector<8x128xf32>
      %c1_i32_18 = arith.constant 1 : i32
      %39 = arith.addf %16, %38 : vector<8x128xf32>
      %c0_19 = arith.constant 0 : index
      %c0_20 = arith.constant 0 : index
      %40 = vector.load %arg4[%c0_19, %c0_20] : memref<8x128xf32, #tpu.memory_space<vmem>>, vector<8x128xf32>
      tpu.vector_store %arg4[%c0_19, %c0_20], %39 {strides = array<i32>} : memref<8x128xf32, #tpu.memory_space<vmem>>, vector<8x128xf32>,
    } else {
    }
    return
  }
  func.func @transform_0(%arg0: i32, %arg1: i32) -> (i32, i32) {
    %c1_i32 = arith.constant 1 : i32
    %0 = arith.muli %arg0, %c1_i32 : i32
    %1 = arith.addi %0, %arg1 : i32
    %c0_i32 = arith.constant 0 : i32
    %2 = arith.minsi %1, %c0_i32 : i32
    %c0_i32_0 = arith.constant 0 : i32
    %c0_i32_1 = arith.constant 0 : i32
    return %2, %c0_i32_0 : i32, i32
  }
  func.func @transform_1(%arg0: i32, %arg1: i32) -> (i32, i32) {
    %c1_i32 = arith.constant 1 : i32
    %0 = arith.muli %arg0, %c1_i32 : i32
    %1 = arith.addi %0, %arg1 : i32
    %c0_i32 = arith.constant 0 : i32
    %2 = arith.minsi %1, %c0_i32 : i32
    %c0_i32_0 = arith.constant 0 : i32
    %c0_i32_1 = arith.constant 0 : i32
    return %2, %c0_i32_0 : i32, i32
  }
  func.func @transform_2(%arg0: i32, %arg1: i32) -> (i32, i32) {
    %c0_i32 = arith.constant 0 : i32
    %c0_i32_0 = arith.constant 0 : i32
    return %arg0, %c0_i32 : i32, i32
  }
}

</mosaic_0001>

<llo_original>
// kernel: tpu_custom_call.1
$region0: #{tpu_custom_call.1}
  #allocation0 [shape = 'u32[]', space=smem, size = 0x4, offset = 0x4, fixed_abs, tag = 'smem constant byte address 0x4 - core index']
  #allocation1 [shape = 'u32[144,128]{1,0:T(1,128)}', space=vmem, size = 0x12000, scoped, tag = 'internal scratch']
  %s0 = inlined_call_operand.hbm [shape: f32[8,128], index: 0, kind: input, shape index: {}]
  %s1 = inlined_call_operand.hbm [shape: f32[8,128], index: 1, kind: input, shape index: {}]
  %s2 = inlined_call_operand.hbm [shape: f32[8,128], index: 2, kind: output, shape index: {}]
  %s3 = sld [smem:[#allocation0]]
  $region38: #{tpu_custom_call.1} parent=0
    _
  %s5 = ssub.s32 1, %s3
  %s6 = scalar_select 0, %s5, %s3
  $region1: #{tpu_custom_call.1} parent=0
    #allocation2 [shape = 'u8[4096]{0}', space=vmem, size = 0x1000, scoped, tag = 'input window, operand 0, single buffered']
    #allocation3 [shape = 's32[1]{0}', space=sflag, size = 0x4, scoped, tag = 'scoped memory for tpu_custom_call.1']
    #allocation4 [shape = 's32[1]{0}', space=sflag, size = 0x4, scoped, tag = 'scoped memory for tpu_custom_call.1']
    #allocation5 [shape = 'u8[4096]{0}', space=vmem, size = 0x1000, scoped, tag = 'input window, operand 1, single buffered']
    #allocation6 [shape = 's32[1]{0}', space=sflag, size = 0x4, scoped, tag = 'scoped memory for tpu_custom_call.1']
    #allocation7 [shape = 'u8[4096]{0}', space=vmem, size = 0x1000, scoped, tag = 'output window, operand 0, single buffered']
    %7 = vsyncpa [#allocation3], 0
    %8 = vsyncpa [#allocation6], 0
    %9 = vsyncpa [#allocation4], 0
    // Predicated region
    $region2: #{tpu_custom_call.1} parent=1 // pred_check
      _
    $region3: #{tpu_custom_call.1} parent=1 // pred_check_branch
      %11 = sbr.rel (0) target = $region5
    $region4: #{tpu_custom_call.1} parent=1 // pred_region
      %s12 = sadd.s32 0, 0
      %p13 = scmp.lt.s32.totalorder %s12, 0
      %s14 = scalar_select %p13, %s12, 0
      %s16 = ssub.s32 128, 128
      %17 = vsyncadd [#allocation3], %s16
      %s18 = smul.addr %s14, 128
      %s19 = scalar_lea.hbm %s0, %s18
      %s21 = sshll.u32 [#allocation2], 4
      %s22 = int_to_ptr.vmem [resolvable:$true] %s21
      %24 = dma.hbm_to_vmem [thread:$0]  %s19, 128, %s22, [#allocation3]
    $region5: #{tpu_custom_call.1} parent=1 // pred_fallthru
      _
    // Predicated region
    $region6: #{tpu_custom_call.1} parent=1 // pred_check
      _
    $region7: #{tpu_custom_call.1} parent=1 // pred_check_branch
      %26 = sbr.rel (0) target = $region9
    $region8: #{tpu_custom_call.1} parent=1 // pred_region
      %s27 = sadd.s32 0, 0
      %p28 = scmp.lt.s32.totalorder %s27, 0
      %s29 = scalar_select %p28, %s27, 0
      %s31 = ssub.s32 128, 128
      %32 = vsyncadd [#allocation6], %s31
      %s33 = smul.addr %s29, 128
      %s34 = scalar_lea.hbm %s1, %s33
      %s36 = sshll.u32 [#allocation5], 4
      %s37 = int_to_ptr.vmem [resolvable:$true] %s36
      %39 = dma.hbm_to_vmem [thread:$0]  %s34, 128, %s37, [#allocation6]
    $region9: #{tpu_custom_call.1} parent=1 // pred_fallthru
      _
    // Predicated region
    $region10: #{tpu_custom_call.1} parent=1 // pred_check
      _
    $region11: #{tpu_custom_call.1} parent=1 // pred_check_branch
      %41 = sbr.rel (0) target = $region13
    $region12: #{tpu_custom_call.1} parent=1 // pred_region
      %42 = dma.done [#allocation3], 128
    $region13: #{tpu_custom_call.1} parent=1 // pred_fallthru
      _
    // Predicated region
    $region14: #{tpu_custom_call.1} parent=1 // pred_check
      _
    $region15: #{tpu_custom_call.1} parent=1 // pred_check_branch
      %44 = sbr.rel (0) target = $region17
    $region16: #{tpu_custom_call.1} parent=1 // pred_region
      %45 = dma.done [#allocation6], 128
    $region17: #{tpu_custom_call.1} parent=1 // pred_fallthru
      _
    %s46 = sadd.s32 0, 0
    %p47 = scmp.lt.s32.totalorder %s46, 0
    %s48 = scalar_select %p47, %s46, 0
    %s49 = sadd.s32 0, 0
    %p50 = scmp.lt.s32.totalorder %s49, 0
    %s51 = scalar_select %p50, %s49, 0
    %p52 = scmp.eq.s32.totalorder 0, 0
    // Predicated region
    $region18: #{tpu_custom_call.1} parent=1 // pred_check
      %p53 = pneg %p52
    $region19: #{tpu_custom_call.1} parent=1 // pred_check_branch
      %55 = sbr.rel (%p53) target = $region21
    $region20: #{tpu_custom_call.1} parent=1 // pred_region
      %56 = vst [vmem:[#allocation7] sm:$0xff] 0.0
    $region21: #{tpu_custom_call.1} parent=1 // pred_fallthru
      _
    %s57 = sadd.s32 0, 0
    %s58 = smul.u32 %s57, 8
    %s59 = sadd.s32 %s58, 8
    %p60 = scmp.le.s32.totalorder %s59, 8
    // Predicated region
    $region22: #{tpu_custom_call.1} parent=1 // pred_check
      %p61 = pneg %p60
    $region23: #{tpu_custom_call.1} parent=1 // pred_check_branch
      %63 = sbr.rel (%p61) target = $region25
    $region24: #{tpu_custom_call.1} parent=1 // pred_region
      %v64 = vld [vmem:[#allocation7] sm:$0xff]
      %v65 = vld [vmem:[#allocation2] sm:$0xff]
      %v66 = vld [vmem:[#allocation5] sm:$0xff]
      %v67 = vmul.f32 %v65, %v66
      %v68 = vsub.f32 1.0, %v67
      %v69 = vmax.f32 %v68, 0.0
      %v70 = vadd.f32 %v69, 0.0
      %v71 = vadd.f32 %v70, 0.0
      %v72 = vadd.f32 %v64, %v71
      %73 = vst [vmem:[#allocation7] sm:$0xff] %v72
    $region25: #{tpu_custom_call.1} parent=1 // pred_fallthru
      _
    %p74 = scmp.gt.s32.totalorder %s59, 8
    // Predicated region
    $region26: #{tpu_custom_call.1} parent=1 // pred_check
      %p75 = pneg %p74
    $region27: #{tpu_custom_call.1} parent=1 // pred_check_branch
      %77 = sbr.rel (%p75) target = $region29
    $region28: #{tpu_custom_call.1} parent=1 // pred_region
      %s78 = ssub.s32 8, %s58
      %v79 = vld [vmem:[#allocation7] sm:$0xff]
      %v80 = vld [vmem:[#allocation2] sm:$0xff]
      %v81 = vld [vmem:[#allocation5] sm:$0xff]
      %v82 = vmul.f32 %v80, %v81
      %v83 = vsub.f32 1.0, %v82
      %v84 = vmax.f32 %v83, 0.0
      %v85 = vlaneseq
      %v86 = vshrl.u32 %v85, 7
      %v87 = vstv %s78
      %vm88 = vcmp.lt.s32.totalorder %v86, %v87
      %v89 = vsel %vm88, %v84, 0.0
      %v90 = vadd.f32 %v89, 0.0
      %v91 = vadd.f32 %v90, 0.0
      %v92 = vadd.f32 %v79, %v91
      %93 = vst [vmem:[#allocation7] sm:$0xff] %v92
    $region29: #{tpu_custom_call.1} parent=1 // pred_fallthru
      _
    // Predicated region
    $region30: #{tpu_custom_call.1} parent=1 // pred_check
      _
    $region31: #{tpu_custom_call.1} parent=1 // pred_check_branch
      %95 = sbr.rel (0) target = $region33
    $region32: #{tpu_custom_call.1} parent=1 // pred_region
      %s97 = ssub.s32 128, 128
      %98 = vsyncadd [#allocation4], %s97
      %s100 = sshll.u32 [#allocation7], 4
      %s101 = int_to_ptr.vmem [resolvable:$true] %s100
      %103 = dma.vmem_to_hbm [thread:$0]  %s101, 128, %s2, [#allocation4]
    $region33: #{tpu_custom_call.1} parent=1 // pred_fallthru
      _
    // Predicated region
    $region34: #{tpu_custom_call.1} parent=1 // pred_check
      _
    $region35: #{tpu_custom_call.1} parent=1 // pred_check_branch
      %105 = sbr.rel (0) target = $region37
    $region36: #{tpu_custom_call.1} parent=1 // pred_region
      %106 = dma.done [#allocation4], 128
    $region37: #{tpu_custom_call.1} parent=1 // pred_fallthru
      _
    %107 = vsyncpa [#allocation3], 1
    %108 = vsyncpa [#allocation6], 1
    %109 = vsyncpa [#allocation4], 1

</llo_original>
